<compile_context>
chip_gen: v7x
topology: tpu7x:2x2x1
jax: 0.10.0
libtpu: 0.0.40
codegen_flags: <defaults>
</compile_context>

<pallas_src>
import functools

import jax
import jax.numpy as jnp
from jax.experimental import pallas as pl
from jax.experimental.pallas import tpu as pltpu

_SUBLANE_F32 = 8  # f32 minimum sublane tile -> batch tile multiple of 8


def _round_up(n: int, m: int) -> int:
    return ((n + m - 1) // m) * m


def _mlp_kernel(x_ref, w1_ref, w2_ref, w3_ref, b_ref, o_ref):
    """Fused (Linear+ReLU) x2 -> Linear on one batch tile.

    x_ref : (TB, in_n)        f32, streamed per grid step (unpadded lanes)
    wK_ref: (prev_n, next_n)  f32, VMEM-resident across all grid steps
    b_ref : (3, max_n)        f32 packed biases, one (zero-padded) row per layer
    o_ref : (TB, out_n)       f32 unpadded output tile
    """
    h1_n = w1_ref.shape[1]
    h2_n = w2_ref.shape[1]
    out_n = w3_ref.shape[1]

    x = x_ref[...]

    # Layer 1: Linear (f32 MXU accumulate) + bias + ReLU
    h1 = jnp.dot(x, w1_ref[...], preferred_element_type=jnp.float32)
    h1 = jnp.maximum(h1 + b_ref[0:1, :h1_n], 0.0)

    # Layer 2: Linear + bias + ReLU
    h2 = jnp.dot(h1, w2_ref[...], preferred_element_type=jnp.float32)
    h2 = jnp.maximum(h2 + b_ref[1:2, :h2_n], 0.0)

    # Output layer: Linear + bias (no activation)
    out = jnp.dot(h2, w3_ref[...], preferred_element_type=jnp.float32)
    o_ref[...] = (out + b_ref[2:3, :out_n]).astype(o_ref.dtype)


def prepare_params(params):
    """One-time param prep (hoisted out of the per-call path).

    params: [(w1,b1),(w2,b2),(w3,b3)] in PyTorch (out,in) layout.
    Returns (w1t, w2t, w3t, bias_packed) with weights as (in,out) f32 and the
    three biases packed into one (3, max_width) f32 array (zero-padded rows).
    """
    (w1, b1), (w2, b2), (w3, b3) = params
    w1t = jnp.asarray(w1, jnp.float32).T
    w2t = jnp.asarray(w2, jnp.float32).T
    w3t = jnp.asarray(w3, jnp.float32).T
    wmax = max(b1.shape[0], b2.shape[0], b3.shape[0])
    bias = jnp.stack([
        jnp.pad(jnp.asarray(b1, jnp.float32), (0, wmax - b1.shape[0])),
        jnp.pad(jnp.asarray(b2, jnp.float32), (0, wmax - b2.shape[0])),
        jnp.pad(jnp.asarray(b3, jnp.float32), (0, wmax - b3.shape[0])),
    ])
    return w1t, w2t, w3t, bias


@functools.partial(jax.jit, static_argnames=("tb",))
def mlp_forward(x, prepped, *, tb=2048):
    """x: (B, in_n) f32.  prepped: output of prepare_params().

    Batch tile guidance: tb=2048 (default) amortizes per-step pipeline overhead
    on all generations; keep tb <= ~4096 (per-row VMEM ~0.9 KB incl. the
    double-buffered x/out tiles and the h1/h2 intermediates) so the default
    scoped-VMEM limits hold on v5e (16 MiB) / v6e-v7x (32 MiB).  For larger tb
    pass pltpu.CompilerParams(vmem_limit_bytes=...) with the computed budget.
    """
    w1t, w2t, w3t, bias = prepped
    B, in_n = x.shape
    h1_n, h2_n, out_n = w1t.shape[1], w2t.shape[1], w3t.shape[1]

    # Clamp the tile to the (sublane-rounded) batch and pad rows only.
    tb = _round_up(min(tb, _round_up(B, _SUBLANE_F32)), _SUBLANE_F32)
    b_p = _round_up(B, tb)

    xp = x.astype(jnp.float32)
    if b_p != B:
        # Padded rows produce ReLU(bias) garbage that is sliced off below.
        xp = jnp.pad(xp, ((0, b_p - B), (0, 0)))

    grid = (b_p // tb,)

    flops = 2 * b_p * (in_n * h1_n + h1_n * h2_n + h2_n * out_n)
    bytes_accessed = (b_p * in_n * 4            # x read (unpadded)
                      + (w1t.size + w2t.size + w3t.size + bias.size) * 4
                      + b_p * out_n * 4)        # output write (unpadded)

    out = pl.pallas_call(
        _mlp_kernel,
        out_shape=jax.ShapeDtypeStruct((b_p, out_n), jnp.float32),
        grid_spec=pltpu.PrefetchScalarGridSpec(
            num_scalar_prefetch=0,
            grid=grid,
            in_specs=[
                # x: streamed batch tile; last dim == full array dim (legal).
                pl.BlockSpec((tb, in_n), lambda i: (i, 0)),
                # weights + packed biases: constant index_map -> VMEM-resident.
                pl.BlockSpec((in_n, h1_n), lambda i: (0, 0)),
                pl.BlockSpec((h1_n, h2_n), lambda i: (0, 0)),
                pl.BlockSpec((h2_n, out_n), lambda i: (0, 0)),
                pl.BlockSpec(bias.shape, lambda i: (0, 0)),
            ],
            out_specs=pl.BlockSpec((tb, out_n), lambda i: (i, 0)),
        ),
        compiler_params=pltpu.CompilerParams(
            dimension_semantics=("parallel",),  # v7x: shard batch tiles over both TCs
        ),
        cost_estimate=pl.CostEstimate(
            flops=flops, transcendentals=0, bytes_accessed=bytes_accessed),
    )(xp, w1t, w2t, w3t, bias)

    return out[:B] if b_p != B else out


def init_linear_params(key, in_n, out_n):
    """Deterministic init mimicking nn.Linear's uniform(-1/sqrt(in), 1/sqrt(in))."""
    kw, kb = jax.random.split(key)
    bound = 1.0 / jnp.sqrt(jnp.float32(in_n))
    # PyTorch layout: weight (out, in), bias (out,)
    w = jax.random.uniform(kw, (out_n, in_n), jnp.float32, -bound, bound)
    b = jax.random.uniform(kb, (out_n,), jnp.float32, -bound, bound)
    return w, b


def reference_mlp(x, params):
    """Plain-JAX f32 reference matching the PyTorch forward (eval mode)."""
    (w1, b1), (w2, b2), (w3, b3) = params
    h = jnp.maximum(x @ w1.T + b1, 0.0)
    h = jnp.maximum(h @ w2.T + b2, 0.0)
    return h @ w3.T + b3


if __name__ == "__main__":
    # mlpModel(in_neurons=32, hidden_neurons=[64, 48], out_neurons=16, dropout=0.0)
    in_neurons, hidden, out_neurons = 32, [64, 48], 16
    batch = 64  # small demo batch; tb=32 -> 2 grid steps (pipelining exercised)

    key = jax.random.PRNGKey(0)
    kx, k1, k2, k3 = jax.random.split(key, 4)

    x = jax.random.normal(kx, (batch, in_neurons), jnp.float32)
    w1, b1 = init_linear_params(k1, in_neurons, hidden[0])
    w2, b2 = init_linear_params(k2, hidden[0], hidden[1])
    w3, b3 = init_linear_params(k3, hidden[1], out_neurons)

    params = ((w1, b1), (w2, b2), (w3, b3))
    prepped = prepare_params(params)  # one-time weight prep, off the call path

    out = mlp_forward(x, prepped, tb=32)
    out = jax.block_until_ready(out)

    ref = reference_mlp(x, params)
    assert out.shape == (batch, out_neurons)
    # f32 operands end-to-end; tolerance only covers MXU accumulation order.
    assert jnp.allclose(out, ref, atol=1e-2, rtol=1e-2), "mismatch vs reference"

    print("KERNEL_OK")
</pallas_src>

<mosaic_0001>
module attributes {stable_mosaic.version = 11 : i64} {
  func.func @_mlp_kernel(%arg0: i32, %arg1: memref<32x32xf32, #tpu.memory_space<vmem>>, %arg2: memref<32x64xf32, #tpu.memory_space<vmem>>, %arg3: memref<64x48xf32, #tpu.memory_space<vmem>>, %arg4: memref<48x16xf32, #tpu.memory_space<vmem>>, %arg5: memref<3x64xf32, #tpu.memory_space<vmem>>, %arg6: memref<32x16xf32, #tpu.memory_space<vmem>>) attributes {dimension_semantics = [#tpu.dimension_semantics<parallel>], iteration_bounds = array<i64: 2>, scalar_prefetch = 0 : i64, scratch_operands = 0 : i64, tpu.core_type = #tpu.core_type<tc>, window_params = [{transform_indices = @transform_0, window_bounds = array<i64: 32, 32>}, {pipeline_mode = #tpu.pipeline_mode<synchronous>, transform_indices = @transform_1, window_bounds = array<i64: 32, 64>}, {pipeline_mode = #tpu.pipeline_mode<synchronous>, transform_indices = @transform_2, window_bounds = array<i64: 64, 48>}, {pipeline_mode = #tpu.pipeline_mode<synchronous>, transform_indices = @transform_3, window_bounds = array<i64: 48, 16>}, {pipeline_mode = #tpu.pipeline_mode<synchronous>, transform_indices = @transform_4, window_bounds = array<i64: 3, 64>}, {transform_indices = @transform_5, window_bounds = array<i64: 32, 16>}]} {
    %c0 = arith.constant 0 : index
    %c0_0 = arith.constant 0 : index
    %0 = vector.load %arg1[%c0, %c0_0] : memref<32x32xf32, #tpu.memory_space<vmem>>, vector<32x32xf32>
    %c0_1 = arith.constant 0 : index
    %c0_2 = arith.constant 0 : index
    %1 = vector.load %arg2[%c0_1, %c0_2] : memref<32x64xf32, #tpu.memory_space<vmem>>, vector<32x64xf32>
    %cst = arith.constant dense<0.000000e+00> : vector<32x64xf32>
    %2 = tpu.matmul %0, %1, %cst {dimension_numbers = #tpu.dot_dimension_numbers<[1], [0], [0], [1], [0, 0, 1, 1], [], []>} : vector<32x32xf32>, vector<32x64xf32>, vector<32x64xf32> -> vector<32x64xf32>
    %c0_3 = arith.constant 0 : index
    %c0_4 = arith.constant 0 : index
    %3 = vector.load %arg5[%c0_3, %c0_4] : memref<3x64xf32, #tpu.memory_space<vmem>>, vector<1x64xf32>
    %4 = vector.broadcast %3 : vector<1x64xf32> to vector<32x64xf32>
    %5 = arith.addf %2, %4 : vector<32x64xf32>
    %cst_5 = arith.constant 0.000000e+00 : f32
    %6 = vector.broadcast %cst_5 : f32 to vector<32x64xf32>
    %7 = arith.maximumf %5, %6 : vector<32x64xf32>
    %c0_6 = arith.constant 0 : index
    %c0_7 = arith.constant 0 : index
    %8 = vector.load %arg3[%c0_6, %c0_7] : memref<64x48xf32, #tpu.memory_space<vmem>>, vector<64x48xf32>
    %cst_8 = arith.constant dense<0.000000e+00> : vector<32x48xf32>
    %9 = tpu.matmul %7, %8, %cst_8 {dimension_numbers = #tpu.dot_dimension_numbers<[1], [0], [0], [1], [0, 0, 1, 1], [], []>} : vector<32x64xf32>, vector<64x48xf32>, vector<32x48xf32> -> vector<32x48xf32>
    %c1 = arith.constant 1 : index
    %c0_9 = arith.constant 0 : index
    %10 = vector.load %arg5[%c1, %c0_9] : memref<3x64xf32, #tpu.memory_space<vmem>>, vector<1x48xf32>
    %11 = vector.broadcast %10 : vector<1x48xf32> to vector<32x48xf32>
    %12 = arith.addf %9, %11 : vector<32x48xf32>
    %cst_10 = arith.constant 0.000000e+00 : f32
    %13 = vector.broadcast %cst_10 : f32 to vector<32x48xf32>
    %14 = arith.maximumf %12, %13 : vector<32x48xf32>
    %c0_11 = arith.constant 0 : index
    %c0_12 = arith.constant 0 : index
    %15 = vector.load %arg4[%c0_11, %c0_12] : memref<48x16xf32, #tpu.memory_space<vmem>>, vector<48x16xf32>
    %cst_13 = arith.constant dense<0.000000e+00> : vector<32x16xf32>
    %16 = tpu.matmul %14, %15, %cst_13 {dimension_numbers = #tpu.dot_dimension_numbers<[1], [0], [0], [1], [0, 0, 1, 1], [], []>} : vector<32x48xf32>, vector<48x16xf32>, vector<32x16xf32> -> vector<32x16xf32>
    %c2 = arith.constant 2 : index
    %c0_14 = arith.constant 0 : index
    %17 = vector.load %arg5[%c2, %c0_14] : memref<3x64xf32, #tpu.memory_space<vmem>>, vector<1x16xf32>
    %18 = vector.broadcast %17 : vector<1x16xf32> to vector<32x16xf32>
    %19 = arith.addf %16, %18 : vector<32x16xf32>
    %c0_15 = arith.constant 0 : index
    %c0_16 = arith.constant 0 : index
    %20 = vector.load %arg6[%c0_15, %c0_16] : memref<32x16xf32, #tpu.memory_space<vmem>>, vector<32x16xf32>
    tpu.vector_store %arg6[%c0_15, %c0_16], %19 {strides = array<i32>} : memref<32x16xf32, #tpu.memory_space<vmem>>, vector<32x16xf32>,
    return
  }
  func.func @transform_0(%arg0: i32) -> (i32, i32) {
    %c0_i32 = arith.constant 0 : i32
    %c0_i32_0 = arith.constant 0 : i32
    return %arg0, %c0_i32 : i32, i32
  }
  func.func @transform_1(%arg0: i32) -> (i32, i32) {
    %c0_i32 = arith.constant 0 : i32
    %c0_i32_0 = arith.constant 0 : i32
    %c0_i32_1 = arith.constant 0 : i32
    return %c0_i32, %c0_i32_0 : i32, i32
  }
  func.func @transform_2(%arg0: i32) -> (i32, i32) {
    %c0_i32 = arith.constant 0 : i32
    %c0_i32_0 = arith.constant 0 : i32
    %c0_i32_1 = arith.constant 0 : i32
    return %c0_i32, %c0_i32_0 : i32, i32
  }
  func.func @transform_3(%arg0: i32) -> (i32, i32) {
    %c0_i32 = arith.constant 0 : i32
    %c0_i32_0 = arith.constant 0 : i32
    %c0_i32_1 = arith.constant 0 : i32
    return %c0_i32, %c0_i32_0 : i32, i32
  }
  func.func @transform_4(%arg0: i32) -> (i32, i32) {
    %c0_i32 = arith.constant 0 : i32
    %c0_i32_0 = arith.constant 0 : i32
    %c0_i32_1 = arith.constant 0 : i32
    return %c0_i32, %c0_i32_0 : i32, i32
  }
  func.func @transform_5(%arg0: i32) -> (i32, i32) {
    %c0_i32 = arith.constant 0 : i32
    %c0_i32_0 = arith.constant 0 : i32
    return %arg0, %c0_i32 : i32, i32
  }
}

</mosaic_0001>

<llo_original>
// kernel: mlp_forward.1
$region0: #{mlp_forward.1}
  #allocation0 [shape = 'u32[]', space=smem, size = 0x4, offset = 0x4, fixed_abs, tag = 'smem constant byte address 0x4 - core index']
  #allocation1 [shape = 'u32[144,128]{1,0:T(1,128)}', space=vmem, size = 0x12000, scoped, tag = 'internal scratch']
  %s0 = inlined_call_operand.vmem [shape: f32[64,32], index: 0, kind: input, shape index: {}]
  %s1 = inlined_call_operand.vmem [shape: f32[32,64], index: 1, kind: input, shape index: {}]
  %s2 = inlined_call_operand.vmem [shape: f32[64,48], index: 2, kind: input, shape index: {}]
  %s3 = inlined_call_operand.vmem [shape: f32[48,16], index: 3, kind: input, shape index: {}]
  %s4 = inlined_call_operand.vmem [shape: f32[3,64], index: 4, kind: input, shape index: {}]
  %s5 = inlined_call_operand.vmem [shape: f32[64,16], index: 5, kind: output, shape index: {}]
  %s6 = sld [smem:[#allocation0]]
  $region53: #{mlp_forward.1} parent=0
    _
  %s8 = ssub.s32 1, %s6
  %s9 = scalar_select 0, %s8, %s6
  loop: start=0, step=1, limit=4
  $region2: #{mlp_forward.1} parent=0 // loop_pre_header
    _
  $region3: #{mlp_forward.1} parent=0 // loop_header
    %s11 = sphi 0, %s15
    %p12 = scmp.ge.s32.totalorder %s11, 4
    %s21 = sphi 0, %s23
    %s24 = sphi 0, %s21
    %s25 = sphi 0, %s24
    %s41 = sphi 0, %s25
    %s45 = sphi 0, %s45
    %s47 = sphi 0, %s45
    %s48 = sphi 0, %s47
    %s62 = sphi 0, %s48
    %s66 = sphi 0, %s66
    %s68 = sphi 0, %s66
    %s69 = sphi 0, %s68
    %s83 = sphi 0, %s69
    %s87 = sphi 0, %s87
    %s89 = sphi 0, %s87
    %s90 = sphi 0, %s89
    %s104 = sphi 0, %s90
    %s108 = sphi 0, %s108
    %s110 = sphi 0, %s108
    %s111 = sphi 0, %s110
    %s125 = sphi 0, %s111
    %s131 = sphi 0, %s133
    %s134 = sphi 0, %s131
    %s135 = sphi 0, %s134
    %s151 = sphi 0, %s135
  $region4: #{mlp_forward.1} parent=0 // loop_header_branch
    %14 = sbr.rel (%p12) target = $region8
  $region5: #{mlp_forward.1} parent=0 // loop_body
    %s16 = ssub.s32 %s11, 1
    %s17 = ssub.s32 %s11, 2
    %s18 = sadd.s32 %s11, 1
    %s19 = ssub.s32 %s11, %s18
    %p20 = scmp.eq.s32.totalorder %s19, 0
    %s22 = sadd.s32 %s21, 1
    %s23 = scalar_select %p20, %s21, %s22
    %p26 = pneg %p20
    %p27 = scmp.eq.s32.totalorder %s11, 1
    %p28 = por %p26, %p27
    %p29 = scmp.ne.s32.totalorder %s21, %s24
    %p30 = scmp.eq.s32.totalorder %s11, 0
    %p31 = por %p29, %p30
    %p32 = scmp.ne.s32.totalorder %s21, %s24
    %p33 = scmp.eq.s32.totalorder %s16, 1
    %p34 = por %p32, %p33
    %p35 = scmp.ne.s32.totalorder %s24, %s25
    %p36 = scmp.eq.s32.totalorder %s16, 0
    %p37 = por %p35, %p36
    %p38 = scmp.ne.s32.totalorder %s24, %s25
    %p39 = scmp.eq.s32.totalorder %s17, 1
    %p40 = por %p38, %p39
    %p42 = scmp.ne.s32.totalorder %s25, %s41
    %p43 = scmp.eq.s32.totalorder %s17, 0
    %p44 = por %p42, %p43
    %s46 = sadd.s32 %s45, 1
    %p49 = scmp.eq.s32.totalorder %s11, 1
    %p50 = scmp.ne.s32.totalorder %s45, %s47
    %p51 = scmp.eq.s32.totalorder %s11, 0
    %p52 = por %p50, %p51
    %p53 = scmp.ne.s32.totalorder %s45, %s47
    %p54 = scmp.eq.s32.totalorder %s16, 1
    %p55 = por %p53, %p54
    %p56 = scmp.ne.s32.totalorder %s47, %s48
    %p57 = scmp.eq.s32.totalorder %s16, 0
    %p58 = por %p56, %p57
    %p59 = scmp.ne.s32.totalorder %s47, %s48
    %p60 = scmp.eq.s32.totalorder %s17, 1
    %p61 = por %p59, %p60
    %p63 = scmp.ne.s32.totalorder %s48, %s62
    %p64 = scmp.eq.s32.totalorder %s17, 0
    %p65 = por %p63, %p64
    %s67 = sadd.s32 %s66, 1
    %p70 = scmp.eq.s32.totalorder %s11, 1
    %p71 = scmp.ne.s32.totalorder %s66, %s68
    %p72 = scmp.eq.s32.totalorder %s11, 0
    %p73 = por %p71, %p72
    %p74 = scmp.ne.s32.totalorder %s66, %s68
    %p75 = scmp.eq.s32.totalorder %s16, 1
    %p76 = por %p74, %p75
    %p77 = scmp.ne.s32.totalorder %s68, %s69
    %p78 = scmp.eq.s32.totalorder %s16, 0
    %p79 = por %p77, %p78
    %p80 = scmp.ne.s32.totalorder %s68, %s69
    %p81 = scmp.eq.s32.totalorder %s17, 1
    %p82 = por %p80, %p81
    %p84 = scmp.ne.s32.totalorder %s69, %s83
    %p85 = scmp.eq.s32.totalorder %s17, 0
    %p86 = por %p84, %p85
    %s88 = sadd.s32 %s87, 1
    %p91 = scmp.eq.s32.totalorder %s11, 1
    %p92 = scmp.ne.s32.totalorder %s87, %s89
    %p93 = scmp.eq.s32.totalorder %s11, 0
    %p94 = por %p92, %p93
    %p95 = scmp.ne.s32.totalorder %s87, %s89
    %p96 = scmp.eq.s32.totalorder %s16, 1
    %p97 = por %p95, %p96
    %p98 = scmp.ne.s32.totalorder %s89, %s90
    %p99 = scmp.eq.s32.totalorder %s16, 0
    %p100 = por %p98, %p99
    %p101 = scmp.ne.s32.totalorder %s89, %s90
    %p102 = scmp.eq.s32.totalorder %s17, 1
    %p103 = por %p101, %p102
    %p105 = scmp.ne.s32.totalorder %s90, %s104
    %p106 = scmp.eq.s32.totalorder %s17, 0
    %p107 = por %p105, %p106
    %s109 = sadd.s32 %s108, 1
    %p112 = scmp.eq.s32.totalorder %s11, 1
    %p113 = scmp.ne.s32.totalorder %s108, %s110
    %p114 = scmp.eq.s32.totalorder %s11, 0
    %p115 = por %p113, %p114
    %p116 = scmp.ne.s32.totalorder %s108, %s110
    %p117 = scmp.eq.s32.totalorder %s16, 1
    %p118 = por %p116, %p117
    %p119 = scmp.ne.s32.totalorder %s110, %s111
    %p120 = scmp.eq.s32.totalorder %s16, 0
    %p121 = por %p119, %p120
    %p122 = scmp.ne.s32.totalorder %s110, %s111
    %p123 = scmp.eq.s32.totalorder %s17, 1
    %p124 = por %p122, %p123
    %p126 = scmp.ne.s32.totalorder %s111, %s125
    %p127 = scmp.eq.s32.totalorder %s17, 0
    %p128 = por %p126, %p127
    %s129 = ssub.s32 %s11, %s18
    %p130 = scmp.eq.s32.totalorder %s129, 0
    %s132 = sadd.s32 %s131, 1
    %s133 = scalar_select %p130, %s131, %s132
    %p136 = pneg %p130
    %p137 = scmp.eq.s32.totalorder %s11, 1
    %p138 = por %p136, %p137
    %p139 = scmp.ne.s32.totalorder %s131, %s134
    %p140 = scmp.eq.s32.totalorder %s11, 0
    %p141 = por %p139, %p140
    %p142 = scmp.ne.s32.totalorder %s131, %s134
    %p143 = scmp.eq.s32.totalorder %s16, 1
    %p144 = por %p142, %p143
    %p145 = scmp.ne.s32.totalorder %s134, %s135
    %p146 = scmp.eq.s32.totalorder %s16, 0
    %p147 = por %p145, %p146
    %p148 = scmp.ne.s32.totalorder %s134, %s135
    %p149 = scmp.eq.s32.totalorder %s17, 1
    %p150 = por %p148, %p149
    %p152 = scmp.ne.s32.totalorder %s135, %s151
    %p153 = scmp.eq.s32.totalorder %s17, 0
    %p154 = por %p152, %p153
    %p155 = scmp.le.s32.totalorder 1, %s11
    %p156 = scmp.lt.s32.totalorder %s11, 3
    %p157 = pnand %p155, %p156
    %p158 = pneg %p157
    // Predicated region
    $region9: #{mlp_forward.1} parent=5 // pred_check
      _
    $region10: #{mlp_forward.1} parent=5 // pred_check_branch
      %160 = sbr.rel (%p157) target = $region12
    $region11: #{mlp_forward.1} parent=5 // pred_region
      %s161 = ssub.s32 %s11, 1
      // Predicated region
      $region13: #{mlp_forward.1} parent=11 // pred_check
        %p162 = pneg %p58
      $region14: #{mlp_forward.1} parent=11 // pred_check_branch
        %164 = sbr.rel (%p162) target = $region16
      $region15: #{mlp_forward.1} parent=11 // pred_region
        _
      $region16: #{mlp_forward.1} parent=11 // pred_fallthru
        _
      // Predicated region
      $region17: #{mlp_forward.1} parent=11 // pred_check
        %p165 = pneg %p79
      $region18: #{mlp_forward.1} parent=11 // pred_check_branch
        %167 = sbr.rel (%p165) target = $region20
      $region19: #{mlp_forward.1} parent=11 // pred_region
        _
      $region20: #{mlp_forward.1} parent=11 // pred_fallthru
        _
      // Predicated region
      $region21: #{mlp_forward.1} parent=11 // pred_check
        %p168 = pneg %p100
      $region22: #{mlp_forward.1} parent=11 // pred_check_branch
        %170 = sbr.rel (%p168) target = $region24
      $region23: #{mlp_forward.1} parent=11 // pred_region
        _
      $region24: #{mlp_forward.1} parent=11 // pred_fallthru
        _
      // Predicated region
      $region25: #{mlp_forward.1} parent=11 // pred_check
        %p171 = pneg %p121
      $region26: #{mlp_forward.1} parent=11 // pred_check_branch
        %173 = sbr.rel (%p171) target = $region28
      $region27: #{mlp_forward.1} parent=11 // pred_region
        _
      $region28: #{mlp_forward.1} parent=11 // pred_fallthru
        _
    $region12: #{mlp_forward.1} parent=5 // pred_fallthru
      _
    %p174 = scmp.lt.s32.totalorder %s11, 2
    // Predicated region
    $region29: #{mlp_forward.1} parent=5 // pred_check
      %p175 = pneg %p174
    $region30: #{mlp_forward.1} parent=5 // pred_check_branch
      %177 = sbr.rel (%p175) target = $region32
    $region31: #{mlp_forward.1} parent=5 // pred_region
      // Predicated region
      $region33: #{mlp_forward.1} parent=31 // pred_check
        %p178 = pneg %p31
      $region34: #{mlp_forward.1} parent=31 // pred_check_branch
        %180 = sbr.rel (%p178) target = $region36
      $region35: #{mlp_forward.1} parent=31 // pred_region
        %s181 = smul.u32 4, %s11
        %p182 = scmp.lt.s32.totalorder %s181, 7
        %s183 = scalar_select %p182, %s181, 7
        %s184 = smul.addr %s183, 8
        %s185 = scalar_lea.vmem %s0, %s184
        %s186 = smul.u32 4, %s11
      $region36: #{mlp_forward.1} parent=31 // pred_fallthru
        _
    $region32: #{mlp_forward.1} parent=5 // pred_fallthru
      _
    %p187 = scmp.le.s32.totalorder 1, %s11
    %p188 = scmp.lt.s32.totalorder %s11, 3
    %p189 = pnand %p187, %p188
    %p190 = pneg %p189
    // Predicated region
    $region37: #{mlp_forward.1} parent=5 // pred_check
      _
    $region38: #{mlp_forward.1} parent=5 // pred_check_branch
      %192 = sbr.rel (%p189) target = $region40
    $region39: #{mlp_forward.1} parent=5 // pred_region
      %s193 = ssub.s32 %s11, 1
      %s194 = smul.u32 4, %s16
      %p195 = scmp.lt.s32.totalorder %s194, 7
      %s196 = scalar_select %p195, %s194, 7
      %s197 = smul.addr %s196, 8
      %s198 = scalar_lea.vmem %s0, %s197
      %p199 = pneg %p37
      %p200 = pneg %p34
      %p201 = pneg %p58
      %p202 = pneg %p55
      %p203 = pneg %p79
      %p204 = pneg %p76
      %p205 = pneg %p100
      %p206 = pneg %p97
      %p207 = pneg %p121
      %p208 = pneg %p118
      %p209 = pneg %p147
      %p210 = pneg %p144
      %s211 = smul.u32 4, %s16
      %p212 = scmp.lt.s32.totalorder %s211, 7
      %s213 = scalar_select %p212, %s211, 7
      %s214 = smul.addr %s213, 8
      %s215 = scalar_lea.vmem %s5, %s214
      %s216 = smul.u32 4, %s16
      %p217 = scmp.lt.s32.totalorder %s216, 7
      %s218 = scalar_select %p217, %s216, 7
      %s219 = smul.addr %s218, 8
      %s220 = scalar_lea.vmem %s0, %s219
      %s221 = smul.u32 4, %s16
      %s222 = smul.u32 4, %s16
      %p223 = scmp.lt.s32.totalorder %s222, 7
      %s224 = scalar_select %p223, %s222, 7
      %s225 = smul.addr %s224, 8
      %s226 = scalar_lea.vmem %s5, %s225
      %s227 = smul.u32 4, %s16
      %v228 = vld [vmem:[%s220] sm:$0xff]
      %v229 = vld [vmem:[%s220 + $0x8] sm:$0xff]
      %v230 = vld [vmem:[%s220 + $0x10] sm:$0xff]
      %v231 = vld [vmem:[%s220 + $0x18] sm:$0xff]
      %v232 = vld [vmem:[%s1] sm:$0xff]
      %v233 = vld [vmem:[%s1 + $0x8] sm:$0xff]
      %v234 = vld [vmem:[%s1 + $0x10] sm:$0xff]
      %v235 = vld [vmem:[%s1 + $0x18] sm:$0xff]
      %v236 = vld [vmem:[%s4] sm:$0x1]
      %v237 = vlaneseq
      %v238 = vshrl.u32 %v237, 7
      %v239 = vsub.s32 0, %v238
      %v240 = vrot.slane %v236, %v239
      %vm241 = vcmask 261120
      %v243 = vsel %vm241, %v228, 0
      %v246 = vsel %vm241, %v229, 0
      %v249 = vsel %vm241, %v230, 0
      %v252 = vsel %vm241, %v231, 0
      %254 = vmatprep.subr.mxu0 0.0
      %255 = vmatpush1.msra.mxu0 %v232
      %256 = vmatprep.subr.mxu0 0.0
      %257 = vmatpush1.msra.mxu0 %v233
      %258 = vmatprep.subr.mxu0 0.0
      %259 = vmatpush1.msra.mxu0 %v234
      %260 = vmatprep.subr.mxu0 0.0
      %261 = vmatpush1.msra.mxu0 %v235
      %262 = vmatprep.subr.mxu0 0.0
      %263 = vmatpush1.msra.mxu0 0.0
      %264 = vmatprep.subr.mxu0 0.0
      %265 = vmatpush1.msra.mxu0 0.0
      %266 = vmatprep.subr.mxu0 0.0
      %267 = vmatpush1.msra.mxu0 0.0
      %268 = vmatprep.subr.mxu0 0.0
      %269 = vmatpush1.msra.mxu0 0.0
      %270 = vmatprep.subr.mxu0 0.0
      %271 = vmatpush1.msra.mxu0 0.0
      %272 = vmatprep.subr.mxu0 0.0
      %273 = vmatpush1.msra.mxu0 0.0
      %274 = vmatprep.subr.mxu0 0.0
      %275 = vmatpush1.msra.mxu0 0.0
      %276 = vmatprep.subr.mxu0 0.0
      %277 = vmatpush1.msra.mxu0 0.0
      %278 = vmatprep.subr.mxu0 0.0
      %279 = vmatpush1.msra.mxu0 0.0
      %280 = vmatprep.subr.mxu0 0.0
      %281 = vmatpush1.msra.mxu0 0.0
      %282 = vmatprep.subr.mxu0 0.0
      %283 = vmatpush1.msra.mxu0 0.0
      %284 = vmatprep.subr.mxu0 0.0
      %285 = vmatpush1.msra.mxu0 0.0
      %286 = vmatprep.subr.mxu0 0.0
      %287 = vmatpush1.msra.mxu0 0.0
      %288 = vmatprep.subr.mxu0 0.0
      %289 = vmatpush1.msra.mxu0 0.0
      %290 = vmatprep.subr.mxu0 0.0
      %291 = vmatpush1.msra.mxu0 0.0
      %292 = vmatprep.subr.mxu0 0.0
      %293 = vmatpush1.msra.mxu0 0.0
      %294 = vmatprep.subr.mxu0 0.0
      %295 = vmatpush1.msra.mxu0 0.0
      %296 = vmatprep.subr.mxu0 0.0
      %297 = vmatpush1.msra.mxu0 0.0
      %298 = vmatprep.subr.mxu0 0.0
      %299 = vmatpush1.msra.mxu0 0.0
      %300 = vmatprep.subr.mxu0 0.0
      %301 = vmatpush1.msra.mxu0 0.0
      %302 = vmatprep.subr.mxu0 0.0
      %303 = vmatpush1.msra.mxu0 0.0
      %304 = vmatprep.subr.mxu0 0.0
      %305 = vmatpush1.msra.mxu0 0.0
      %306 = vmatprep.subr.mxu0 0.0
      %307 = vmatpush1.msra.mxu0 0.0
      %308 = vmatprep.subr.mxu0 0.0
      %309 = vmatpush1.msra.mxu0 0.0
      %310 = vmatprep.subr.mxu0 0.0
      %311 = vmatpush1.msra.mxu0 0.0
      %312 = vmatprep.subr.mxu0 0.0
      %313 = vmatpush1.msra.mxu0 0.0
      %314 = vmatprep.subr.mxu0 0.0
      %315 = vmatpush1.msra.mxu0 0.0
      %316 = vmatprep.subr.mxu0 0.0
      %317 = vmatpush1.msra.mxu0 0.0
      %318 = vmatprep.mubr.f32.mxu0 0.0
      %319 = vmatmul.mubr.f32.gmra.mrb[0].mxu0 %v243
      %v320 = vpop.f32.mrb[0].mxu0
      %v321 = vadd.f32 %v240, %v320
      %v322 = vpop.f32.mrb[0].mxu0
      %323 = vmatprep.mubr.f32.mxu0 0.0
      %324 = vmatmul.mubr.f32.gmra.mrb[0].mxu0 %v246
      %v325 = vpop.f32.mrb[0].mxu0
      %v326 = vadd.f32 %v240, %v325
      %v327 = vpop.f32.mrb[0].mxu0
      %328 = vmatprep.mubr.f32.mxu0 0.0
      %329 = vmatmul.mubr.f32.gmra.mrb[0].mxu0 %v249
      %v330 = vpop.f32.mrb[0].mxu0
      %v331 = vadd.f32 %v240, %v330
      %v332 = vpop.f32.mrb[0].mxu0
      %333 = vmatprep.mubr.f32.mxu0 0.0
      %334 = vmatmul.mubr.f32.gmra.mrb[0].mxu0 %v252
      %v335 = vpop.f32.mrb[0].mxu0
      %v336 = vadd.f32 %v240, %v335
      %v337 = vpop.f32.mrb[0].mxu0
      %338 = vdwg.mxu0
      %v339 = vmax.f32 %v321, 0.0
      %v340 = vmax.f32 %v326, 0.0
      %v341 = vmax.f32 %v331, 0.0
      %v342 = vmax.f32 %v336, 0.0
      %v343 = vld [vmem:[%s2] sm:$0xff]
      %v344 = vld [vmem:[%s2 + $0x8] sm:$0xff]
      %v345 = vld [vmem:[%s2 + $0x10] sm:$0xff]
      %v346 = vld [vmem:[%s2 + $0x18] sm:$0xff]
      %v347 = vld [vmem:[%s2 + $0x20] sm:$0xff]
      %v348 = vld [vmem:[%s2 + $0x28] sm:$0xff]
      %v349 = vld [vmem:[%s2 + $0x30] sm:$0xff]
      %v350 = vld [vmem:[%s2 + $0x38] sm:$0xff]
      %v351 = vld [vmem:[%s4 + $0x1] sm:$0x1]
      %v352 = vlaneseq
      %v353 = vshrl.u32 %v352, 7
      %v354 = vsub.s32 0, %v353
      %v355 = vrot.slane %v351, %v354
      %vm356 = vcmask 523264
      %v358 = vsel %vm356, %v339, 0
      %v361 = vsel %vm356, %v340, 0
      %v364 = vsel %vm356, %v341, 0
      %v367 = vsel %vm356, %v342, 0
      %369 = vmatprep.subr.mxu0 0.0
      %370 = vmatpush1.msra.mxu0 %v343
      %371 = vmatprep.subr.mxu0 0.0
      %372 = vmatpush1.msra.mxu0 %v344
      %373 = vmatprep.subr.mxu0 0.0
      %374 = vmatpush1.msra.mxu0 %v345
      %375 = vmatprep.subr.mxu0 0.0
      %376 = vmatpush1.msra.mxu0 %v346
      %377 = vmatprep.subr.mxu0 0.0
      %378 = vmatpush1.msra.mxu0 %v347
      %379 = vmatprep.subr.mxu0 0.0
      %380 = vmatpush1.msra.mxu0 %v348
      %381 = vmatprep.subr.mxu0 0.0
      %382 = vmatpush1.msra.mxu0 %v349
      %383 = vmatprep.subr.mxu0 0.0
      %384 = vmatpush1.msra.mxu0 %v350
      %385 = vmatprep.subr.mxu0 0.0
      %386 = vmatpush1.msra.mxu0 0.0
      %387 = vmatprep.subr.mxu0 0.0
      %388 = vmatpush1.msra.mxu0 0.0
      %389 = vmatprep.subr.mxu0 0.0
      %390 = vmatpush1.msra.mxu0 0.0
      %391 = vmatprep.subr.mxu0 0.0
      %392 = vmatpush1.msra.mxu0 0.0
      %393 = vmatprep.subr.mxu0 0.0
      %394 = vmatpush1.msra.mxu0 0.0
      %395 = vmatprep.subr.mxu0 0.0
      %396 = vmatpush1.msra.mxu0 0.0
      %397 = vmatprep.subr.mxu0 0.0
      %398 = vmatpush1.msra.mxu0 0.0
      %399 = vmatprep.subr.mxu0 0.0
      %400 = vmatpush1.msra.mxu0 0.0
      %401 = vmatprep.subr.mxu0 0.0
      %402 = vmatpush1.msra.mxu0 0.0
      %403 = vmatprep.subr.mxu0 0.0
      %404 = vmatpush1.msra.mxu0 0.0
      %405 = vmatprep.subr.mxu0 0.0
      %406 = vmatpush1.msra.mxu0 0.0
      %407 = vmatprep.subr.mxu0 0.0
      %408 = vmatpush1.msra.mxu0 0.0
      %409 = vmatprep.subr.mxu0 0.0
      %410 = vmatpush1.msra.mxu0 0.0
      %411 = vmatprep.subr.mxu0 0.0
      %412 = vmatpush1.msra.mxu0 0.0
      %413 = vmatprep.subr.mxu0 0.0
      %414 = vmatpush1.msra.mxu0 0.0
      %415 = vmatprep.subr.mxu0 0.0
      %416 = vmatpush1.msra.mxu0 0.0
      %417 = vmatprep.subr.mxu0 0.0
      %418 = vmatpush1.msra.mxu0 0.0
      %419 = vmatprep.subr.mxu0 0.0
      %420 = vmatpush1.msra.mxu0 0.0
      %421 = vmatprep.subr.mxu0 0.0
      %422 = vmatpush1.msra.mxu0 0.0
      %423 = vmatprep.subr.mxu0 0.0
      %424 = vmatpush1.msra.mxu0 0.0
      %425 = vmatprep.subr.mxu0 0.0
      %426 = vmatpush1.msra.mxu0 0.0
      %427 = vmatprep.subr.mxu0 0.0
      %428 = vmatpush1.msra.mxu0 0.0
      %429 = vmatprep.subr.mxu0 0.0
      %430 = vmatpush1.msra.mxu0 0.0
      %431 = vmatprep.subr.mxu0 0.0
      %432 = vmatpush1.msra.mxu0 0.0
      %433 = vmatprep.mubr.f32.mxu0 0.0
      %434 = vmatmul.mubr.f32.gmra.mrb[0].mxu0 %v358
      %v435 = vpop.f32.mrb[0].mxu0
      %v436 = vadd.f32 %v355, %v435
      %v437 = vpop.f32.mrb[0].mxu0
      %438 = vmatprep.mubr.f32.mxu0 0.0
      %439 = vmatmul.mubr.f32.gmra.mrb[0].mxu0 %v361
      %v440 = vpop.f32.mrb[0].mxu0
      %v441 = vadd.f32 %v355, %v440
      %v442 = vpop.f32.mrb[0].mxu0
      %443 = vmatprep.mubr.f32.mxu0 0.0
      %444 = vmatmul.mubr.f32.gmra.mrb[0].mxu0 %v364
      %v445 = vpop.f32.mrb[0].mxu0
      %v446 = vadd.f32 %v355, %v445
      %v447 = vpop.f32.mrb[0].mxu0
      %448 = vmatprep.mubr.f32.mxu0 0.0
      %449 = vmatmul.mubr.f32.gmra.mrb[0].mxu0 %v367
      %v450 = vpop.f32.mrb[0].mxu0
      %v451 = vadd.f32 %v355, %v450
      %v452 = vpop.f32.mrb[0].mxu0
      %453 = vdwg.mxu0
      %v454 = vmax.f32 %v436, 0.0
      %v455 = vmax.f32 %v441, 0.0
      %v456 = vmax.f32 %v446, 0.0
      %v457 = vmax.f32 %v451, 0.0
      %v458 = vld [vmem:[%s3] sm:$0xff]
      %v459 = vld [vmem:[%s3 + $0x8] sm:$0xff]
      %v460 = vld [vmem:[%s3 + $0x10] sm:$0xff]
      %v461 = vld [vmem:[%s3 + $0x18] sm:$0xff]
      %v462 = vld [vmem:[%s3 + $0x20] sm:$0xff]
      %v463 = vld [vmem:[%s3 + $0x28] sm:$0xff]
      %v464 = vld [vmem:[%s4 + $0x2] sm:$0x1]
      %v465 = vlaneseq
      %v466 = vshrl.u32 %v465, 7
      %v467 = vsub.s32 0, %v466
      %v468 = vrot.slane %v464, %v467
      %vm469 = vcmask 392192
      %v471 = vsel %vm469, %v454, 0
      %v474 = vsel %vm469, %v455, 0
      %v477 = vsel %vm469, %v456, 0
      %v480 = vsel %vm469, %v457, 0
      %482 = vmatprep.subr.mxu0 0.0
      %483 = vmatpush1.msra.mxu0 %v458
      %484 = vmatprep.subr.mxu0 0.0
      %485 = vmatpush1.msra.mxu0 %v459
      %486 = vmatprep.subr.mxu0 0.0
      %487 = vmatpush1.msra.mxu0 %v460
      %488 = vmatprep.subr.mxu0 0.0
      %489 = vmatpush1.msra.mxu0 %v461
      %490 = vmatprep.subr.mxu0 0.0
      %491 = vmatpush1.msra.mxu0 %v462
      %492 = vmatprep.subr.mxu0 0.0
      %493 = vmatpush1.msra.mxu0 %v463
      %494 = vmatprep.subr.mxu0 0.0
      %495 = vmatpush1.msra.mxu0 0.0
      %496 = vmatprep.subr.mxu0 0.0
      %497 = vmatpush1.msra.mxu0 0.0
      %498 = vmatprep.subr.mxu0 0.0
      %499 = vmatpush1.msra.mxu0 0.0
      %500 = vmatprep.subr.mxu0 0.0
      %501 = vmatpush1.msra.mxu0 0.0
      %502 = vmatprep.subr.mxu0 0.0
      %503 = vmatpush1.msra.mxu0 0.0
      %504 = vmatprep.subr.mxu0 0.0
      %505 = vmatpush1.msra.mxu0 0.0
      %506 = vmatprep.subr.mxu0 0.0
      %507 = vmatpush1.msra.mxu0 0.0
      %508 = vmatprep.subr.mxu0 0.0
      %509 = vmatpush1.msra.mxu0 0.0
      %510 = vmatprep.subr.mxu0 0.0
      %511 = vmatpush1.msra.mxu0 0.0
      %512 = vmatprep.subr.mxu0 0.0
      %513 = vmatpush1.msra.mxu0 0.0
      %514 = vmatprep.subr.mxu0 0.0
      %515 = vmatpush1.msra.mxu0 0.0
      %516 = vmatprep.subr.mxu0 0.0
      %517 = vmatpush1.msra.mxu0 0.0
      %518 = vmatprep.subr.mxu0 0.0
      %519 = vmatpush1.msra.mxu0 0.0
      %520 = vmatprep.subr.mxu0 0.0
      %521 = vmatpush1.msra.mxu0 0.0
      %522 = vmatprep.subr.mxu0 0.0
      %523 = vmatpush1.msra.mxu0 0.0
      %524 = vmatprep.subr.mxu0 0.0
      %525 = vmatpush1.msra.mxu0 0.0
      %526 = vmatprep.subr.mxu0 0.0
      %527 = vmatpush1.msra.mxu0 0.0
      %528 = vmatprep.subr.mxu0 0.0
      %529 = vmatpush1.msra.mxu0 0.0
      %530 = vmatprep.subr.mxu0 0.0
      %531 = vmatpush1.msra.mxu0 0.0
      %532 = vmatprep.subr.mxu0 0.0
      %533 = vmatpush1.msra.mxu0 0.0
      %534 = vmatprep.subr.mxu0 0.0
      %535 = vmatpush1.msra.mxu0 0.0
      %536 = vmatprep.subr.mxu0 0.0
      %537 = vmatpush1.msra.mxu0 0.0
      %538 = vmatprep.subr.mxu0 0.0
      %539 = vmatpush1.msra.mxu0 0.0
      %540 = vmatprep.subr.mxu0 0.0
      %541 = vmatpush1.msra.mxu0 0.0
      %542 = vmatprep.subr.mxu0 0.0
      %543 = vmatpush1.msra.mxu0 0.0
      %544 = vmatprep.subr.mxu0 0.0
      %545 = vmatpush1.msra.mxu0 0.0
      %546 = vmatprep.mubr.f32.mxu0 0.0
      %547 = vmatmul.mubr.f32.gmra.mrb[0].mxu0 %v471
      %v548 = vpop.f32.mrb[0].mxu0
      %v549 = vadd.f32 %v468, %v548
      %v550 = vpop.f32.mrb[0].mxu0
      %551 = vmatprep.mubr.f32.mxu0 0.0
      %552 = vmatmul.mubr.f32.gmra.mrb[0].mxu0 %v474
      %v553 = vpop.f32.mrb[0].mxu0
      %v554 = vadd.f32 %v468, %v553
      %v555 = vpop.f32.mrb[0].mxu0
      %556 = vmatprep.mubr.f32.mxu0 0.0
      %557 = vmatmul.mubr.f32.gmra.mrb[0].mxu0 %v477
      %v558 = vpop.f32.mrb[0].mxu0
      %v559 = vadd.f32 %v468, %v558
      %v560 = vpop.f32.mrb[0].mxu0
      %561 = vmatprep.mubr.f32.mxu0 0.0
      %562 = vmatmul.mubr.f32.gmra.mrb[0].mxu0 %v480
      %v563 = vpop.f32.mrb[0].mxu0
      %v564 = vadd.f32 %v468, %v563
      %v565 = vpop.f32.mrb[0].mxu0
      %566 = vdwg.mxu0
      %vm567 = vcmask 130048
      %568 = vst.msk [vmem:[%s226] sm:$0xff] %vm567, %v549
      %569 = vst.msk [vmem:[%s226 + $0x8] sm:$0xff] %vm567, %v554
      %570 = vst.msk [vmem:[%s226 + $0x10] sm:$0xff] %vm567, %v559
      %571 = vst.msk [vmem:[%s226 + $0x18] sm:$0xff] %vm567, %v564
      %s572 = smul.u32 4, %s16
      %p573 = scmp.lt.s32.totalorder %s572, 7
      %s574 = scalar_select %p573, %s572, 7
      %s575 = smul.addr %s574, 8
      %s576 = scalar_lea.vmem %s5, %s575
      // Predicated region
      $region41: #{mlp_forward.1} parent=39 // pred_check
        %p577 = pneg %p144
      $region42: #{mlp_forward.1} parent=39 // pred_check_branch
        %579 = sbr.rel (%p577) target = $region44
      $region43: #{mlp_forward.1} parent=39 // pred_region
        %s580 = smul.u32 4, %s16
      $region44: #{mlp_forward.1} parent=39 // pred_fallthru
        _
    $region40: #{mlp_forward.1} parent=5 // pred_fallthru
      _
    %p581 = scmp.le.s32.totalorder 2, %s11
    // Predicated region
    $region45: #{mlp_forward.1} parent=5 // pred_check
      %p582 = pneg %p581
    $region46: #{mlp_forward.1} parent=5 // pred_check_branch
      %584 = sbr.rel (%p582) target = $region48
    $region47: #{mlp_forward.1} parent=5 // pred_region
      %s585 = ssub.s32 %s11, 2
      // Predicated region
      $region49: #{mlp_forward.1} parent=47 // pred_check
        %p586 = pneg %p150
      $region50: #{mlp_forward.1} parent=47 // pred_check_branch
        %588 = sbr.rel (%p586) target = $region52
      $region51: #{mlp_forward.1} parent=47 // pred_region
        %s589 = smul.u32 4, %s17
        %p590 = scmp.lt.s32.totalorder %s589, 7
        %s591 = scalar_select %p590, %s589, 7
        %s592 = smul.addr %s591, 8
        %s593 = scalar_lea.vmem %s5, %s592
      $region52: #{mlp_forward.1} parent=47 // pred_fallthru
        _
    $region48: #{mlp_forward.1} parent=5 // pred_fallthru
      _
  $region6: #{mlp_forward.1} parent=0 // loop_footer
    %s15 = sadd.s32 1, %s11
  $region7: #{mlp_forward.1} parent=0 // loop_footer_branch
    %10 = sbr.rel target = $region3
  $region8: #{mlp_forward.1} parent=0 // loop_exit
    _

</llo_original>
